<compile_context>
chip_gen: v7x
topology: tpu7x:2x2x1
jax: 0.10.0
libtpu: 0.0.40
codegen_flags: <defaults>
</compile_context>

<pallas_src>
import jax
import jax.numpy as jnp
from jax.experimental import pallas as pl
from jax.experimental.pallas import tpu as pltpu


def _round_up(x, m):
    return (x + m - 1) // m * m


def _camera_kernel(inp_ref, out_ref):
    """inp_ref: (13, TB); out_ref: (32, TB). Batch on lanes, components on sublanes."""
    f32 = jnp.float32
    tb = out_ref.shape[1]
    ones = jnp.ones((1, tb), f32)

    # ---- read all packed inputs first (values, so later stores cannot alias) ----
    fx = inp_ref[0:1, :]
    fy = inp_ref[1:2, :]
    cx = inp_ref[2:3, :]
    cy = inp_ref[3:4, :]
    x0r, x1r, x2r = inp_ref[4:5, :], inp_ref[5:6, :], inp_ref[6:7, :]
    y0r, y1r, y2r = inp_ref[7:8, :], inp_ref[8:9, :], inp_ref[9:10, :]
    t0, t1, t2 = inp_ref[10:11, :], inp_ref[11:12, :], inp_ref[12:13, :]

    # ---- rotation: ortho2rotation (Gram-Schmidt) on the 6-vector, per lane ----
    x_mag = jnp.maximum(jnp.sqrt(x0r * x0r + x1r * x1r + x2r * x2r), 1e-8)
    inv_x = 1.0 / (x_mag + 1e-10)
    x0, x1, x2 = x0r * inv_x, x1r * inv_x, x2r * inv_x

    inner = x0 * y0r + x1 * y1r + x2 * y2r
    norm2 = jnp.maximum(x0 * x0 + x1 * x1 + x2 * x2, 1e-8)
    factor = inner / (norm2 + 1e-10)
    yr0, yr1, yr2 = y0r - factor * x0, y1r - factor * x1, y2r - factor * x2
    y_mag = jnp.maximum(jnp.sqrt(yr0 * yr0 + yr1 * yr1 + yr2 * yr2), 1e-8)
    inv_y = 1.0 / (y_mag + 1e-10)
    y0, y1, y2 = yr0 * inv_y, yr1 * inv_y, yr2 * inv_y

    z0 = x1 * y2 - x2 * y1
    z1 = x2 * y0 - x0 * y2
    z2 = x0 * y1 - x1 * y0

    # ---- zero the whole output slab once (full-vreg stores), then fill rows ----
    out_ref[...] = jnp.zeros((32, tb), f32)

    # K = eye(4); K[0,0]=fx K[1,1]=fy K[0,2]=cx K[1,2]=cy  (row-major flat = 4*r+c)
    out_ref[0:1, :] = fx       # (0,0)
    out_ref[2:3, :] = cx       # (0,2)
    out_ref[5:6, :] = fy       # (1,1)
    out_ref[6:7, :] = cy       # (1,2)
    out_ref[10:11, :] = ones   # (2,2)
    out_ref[15:16, :] = ones   # (3,3)

    # pose: [:3,:3] = [x | y | z] (columns), [:3,3] = t, [3,3] = 1   (offset +16)
    out_ref[16:17, :] = x0
    out_ref[17:18, :] = y0
    out_ref[18:19, :] = z0
    out_ref[19:20, :] = t0
    out_ref[20:21, :] = x1
    out_ref[21:22, :] = y1
    out_ref[22:23, :] = z1
    out_ref[23:24, :] = t1
    out_ref[24:25, :] = x2
    out_ref[25:26, :] = y2
    out_ref[26:27, :] = z2
    out_ref[27:28, :] = t2
    out_ref[31:32, :] = ones


def optimizable_cameras_forward(params, cam_index, intrinsics_0, pose_0, *, tile=None):
    """JAX/Pallas equivalent of OptimizableCameras.forward."""
    intrinsics_res, rotation_res, translation_res = params
    if intrinsics_0.ndim < 3:
        intrinsics_0 = intrinsics_0[None]
        pose_0 = pose_0[None]
    cam_index = jnp.atleast_1d(cam_index)
    bs = intrinsics_0.shape[0]
    f32 = jnp.float32
    intrinsics_0 = intrinsics_0.astype(f32)
    pose_0 = pose_0.astype(f32)
    intrinsics_res = intrinsics_res.astype(f32)
    rotation_res = rotation_res.astype(f32)
    translation_res = translation_res.astype(f32)

    # --- XLA glue: gather residuals by cam_index, add bases, pack everything as
    # a single (13, bs) slab so the batch sits on the TPU lane axis.
    rows = jnp.array([0, 1, 0, 1])
    cols = jnp.array([0, 1, 2, 2])
    intr = intrinsics_0[:, rows, cols] + jnp.take(intrinsics_res, cam_index, axis=0)   # (bs, 4)
    rot6 = (jnp.transpose(pose_0[:, :3, :2], (0, 2, 1)).reshape(bs, 6)
            + jnp.take(rotation_res, cam_index, axis=0).reshape(bs, 6))                # (bs, 6)
    trans = pose_0[:, :3, 3] + jnp.take(translation_res, cam_index, axis=0)            # (bs, 3)
    packed = jnp.concatenate([intr, rot6, trans], axis=1).T                            # (13, bs)

    # --- batch tiling: lane-multiple tiles, bounded VMEM, pipelined 1-D grid.
    if tile is None:
        tile = min(16384, _round_up(bs, 128))   # ~3 MB/tile for in+out, double-buffered
    tile = max(128, _round_up(tile, 128))
    bs_pad = _round_up(bs, tile)
    if bs_pad != bs:
        packed = jnp.pad(packed, ((0, 0), (0, bs_pad - bs)))  # zero pad: NaN-free math
    n_tiles = pl.cdiv(bs_pad, tile)

    out = pl.pallas_call(
        _camera_kernel,
        grid=(n_tiles,),
        in_specs=[pl.BlockSpec((13, tile), lambda i: (0, i))],
        out_specs=pl.BlockSpec((32, tile), lambda i: (0, i)),
        out_shape=jax.ShapeDtypeStruct((32, bs_pad), f32),
        compiler_params=pltpu.CompilerParams(
            dimension_semantics=("parallel",)),   # megacore sharding on v7x
    )(packed)

    out = out[:, :bs]
    K = out[:16, :].T.reshape(bs, 4, 4)
    pose = out[16:, :].T.reshape(bs, 4, 4)
    return K, pose


def reference_forward(params, cam_index, intrinsics_0, pose_0):
    """Pure-JAX reference matching the PyTorch semantics exactly."""
    intrinsics_res, rotation_res, translation_res = params
    bs = intrinsics_0.shape[0]
    rows = jnp.array([0, 1, 0, 1])
    cols = jnp.array([0, 1, 2, 2])
    p = intrinsics_0[:, rows, cols] + intrinsics_res[cam_index]
    K = jnp.tile(jnp.eye(4, dtype=jnp.float32)[None], (bs, 1, 1))
    K = K.at[:, rows, cols].set(p)

    poses = (rotation_res[cam_index]
             + jnp.transpose(pose_0[:, :3, :2], (0, 2, 1))).reshape(bs, 6)
    x_raw, y_raw = poses[:, 0:3], poses[:, 3:6]

    def normalize(v):
        m = jnp.maximum(jnp.sqrt(jnp.sum(v * v, 1, keepdims=True)), 1e-8)
        return v / (m + 1e-10)

    x = normalize(x_raw)
    inner = jnp.sum(x * y_raw, 1, keepdims=True)
    n2 = jnp.maximum(jnp.sum(x * x, 1, keepdims=True), 1e-8)
    y = normalize(y_raw - (inner / (n2 + 1e-10)) * x)
    z = jnp.cross(x, y)
    R = jnp.stack([x, y, z], axis=2)

    pose = jnp.zeros((bs, 4, 4), jnp.float32)
    pose = pose.at[:, :3, :3].set(R)
    pose = pose.at[:, 3, 3].set(1.0)
    pose = pose.at[:, :3, 3].set(translation_res[cam_index] + pose_0[:, :3, 3])
    return K, pose


if __name__ == "__main__":
    key = jax.random.PRNGKey(0)
    f32 = jnp.float32

    # ------------------------------------------------------------------ test 1
    n_cameras = 8
    bs = 2
    k1, k2, k3, k4, k5 = jax.random.split(key, 5)

    intrinsics_res = 0.01 * jax.random.normal(k1, (n_cameras, 4), f32)
    rotation_res = 0.01 * jax.random.normal(k2, (n_cameras, 2, 3), f32)
    translation_res = 0.01 * jax.random.normal(k3, (n_cameras, 3), f32)
    params = (intrinsics_res, rotation_res, translation_res)

    cam_index = jnp.array([1, 3], dtype=jnp.int32)

    intrinsics_0 = jnp.tile(jnp.eye(4, dtype=f32)[None], (bs, 1, 1))
    intrinsics_0 = intrinsics_0.at[:, 0, 0].set(jnp.array([500.0, 520.0]))
    intrinsics_0 = intrinsics_0.at[:, 1, 1].set(jnp.array([505.0, 515.0]))
    intrinsics_0 = intrinsics_0.at[:, 0, 2].set(jnp.array([320.0, 310.0]))
    intrinsics_0 = intrinsics_0.at[:, 1, 2].set(jnp.array([240.0, 250.0]))

    R0 = (jnp.tile(jnp.eye(3, dtype=f32)[None], (bs, 1, 1))
          + 0.1 * jax.random.normal(k4, (bs, 3, 3), f32))
    t0 = jax.random.normal(k5, (bs, 3), f32)
    pose_0 = jnp.tile(jnp.eye(4, dtype=f32)[None], (bs, 1, 1))
    pose_0 = pose_0.at[:, :3, :3].set(R0)
    pose_0 = pose_0.at[:, :3, 3].set(t0)

    K, pose = optimizable_cameras_forward(params, cam_index, intrinsics_0, pose_0)
    (K, pose) = jax.block_until_ready((K, pose))

    K_ref, pose_ref = reference_forward(params, cam_index, intrinsics_0, pose_0)
    assert K.shape == (bs, 4, 4) and pose.shape == (bs, 4, 4)
    assert jnp.allclose(K, K_ref, atol=1e-5), "intrinsics mismatch (bs=2)"
    assert jnp.allclose(pose, pose_ref, atol=1e-5), "pose mismatch (bs=2)"

    # ------------------------------------------------------ test 2 (multi-tile)
    n_cameras2 = 16
    bs2 = 200
    kk = jax.random.split(jax.random.PRNGKey(0), 8)
    params2 = (0.01 * jax.random.normal(kk[0], (n_cameras2, 4), f32),
               0.01 * jax.random.normal(kk[1], (n_cameras2, 2, 3), f32),
               0.01 * jax.random.normal(kk[2], (n_cameras2, 3), f32))
    cam_index2 = jax.random.randint(kk[3], (bs2,), 0, n_cameras2)

    intr2 = jnp.tile(jnp.eye(4, dtype=f32)[None], (bs2, 1, 1))
    intr2 = intr2.at[:, 0, 0].set(400.0 + 200.0 * jax.random.uniform(kk[4], (bs2,)))
    intr2 = intr2.at[:, 1, 1].set(400.0 + 200.0 * jax.random.uniform(kk[5], (bs2,)))
    intr2 = intr2.at[:, 0, 2].set(320.0)
    intr2 = intr2.at[:, 1, 2].set(240.0)

    R02 = (jnp.tile(jnp.eye(3, dtype=f32)[None], (bs2, 1, 1))
           + 0.1 * jax.random.normal(kk[6], (bs2, 3, 3), f32))
    t02 = jax.random.normal(kk[7], (bs2, 3), f32)
    pose_02 = jnp.tile(jnp.eye(4, dtype=f32)[None], (bs2, 1, 1))
    pose_02 = pose_02.at[:, :3, :3].set(R02)
    pose_02 = pose_02.at[:, :3, 3].set(t02)

    # tile=128 forces a 2-step grid plus tail padding.
    K2, pose2 = optimizable_cameras_forward(params2, cam_index2, intr2, pose_02, tile=128)
    (K2, pose2) = jax.block_until_ready((K2, pose2))
    K2_ref, pose2_ref = reference_forward(params2, cam_index2, intr2, pose_02)
    assert jnp.allclose(K2, K2_ref, atol=1e-5), "intrinsics mismatch (bs=200)"
    assert jnp.allclose(pose2, pose2_ref, atol=1e-5), "pose mismatch (bs=200)"

    print("KERNEL_OK")
</pallas_src>

<mosaic_0001>
module attributes {stable_mosaic.version = 11 : i64} {
  func.func @_camera_kernel(%arg0: i32, %arg1: memref<13x128xf32, #tpu.memory_space<vmem>>, %arg2: memref<32x128xf32, #tpu.memory_space<vmem>>) attributes {dimension_semantics = [#tpu.dimension_semantics<parallel>], iteration_bounds = array<i64: 1>, scalar_prefetch = 0 : i64, scratch_operands = 0 : i64, tpu.core_type = #tpu.core_type<tc>, window_params = [{transform_indices = @transform_0, window_bounds = array<i64: 13, 128>}, {transform_indices = @transform_1, window_bounds = array<i64: 32, 128>}]} {
    %cst = arith.constant 1.000000e+00 : f32
    %0 = vector.broadcast %cst : f32 to vector<1x128xf32>
    %c0 = arith.constant 0 : index
    %c0_0 = arith.constant 0 : index
    %1 = vector.load %arg1[%c0, %c0_0] : memref<13x128xf32, #tpu.memory_space<vmem>>, vector<1x128xf32>
    %c1 = arith.constant 1 : index
    %c0_1 = arith.constant 0 : index
    %2 = vector.load %arg1[%c1, %c0_1] : memref<13x128xf32, #tpu.memory_space<vmem>>, vector<1x128xf32>
    %c2 = arith.constant 2 : index
    %c0_2 = arith.constant 0 : index
    %3 = vector.load %arg1[%c2, %c0_2] : memref<13x128xf32, #tpu.memory_space<vmem>>, vector<1x128xf32>
    %c3 = arith.constant 3 : index
    %c0_3 = arith.constant 0 : index
    %4 = vector.load %arg1[%c3, %c0_3] : memref<13x128xf32, #tpu.memory_space<vmem>>, vector<1x128xf32>
    %c4 = arith.constant 4 : index
    %c0_4 = arith.constant 0 : index
    %5 = vector.load %arg1[%c4, %c0_4] : memref<13x128xf32, #tpu.memory_space<vmem>>, vector<1x128xf32>
    %c5 = arith.constant 5 : index
    %c0_5 = arith.constant 0 : index
    %6 = vector.load %arg1[%c5, %c0_5] : memref<13x128xf32, #tpu.memory_space<vmem>>, vector<1x128xf32>
    %c6 = arith.constant 6 : index
    %c0_6 = arith.constant 0 : index
    %7 = vector.load %arg1[%c6, %c0_6] : memref<13x128xf32, #tpu.memory_space<vmem>>, vector<1x128xf32>
    %c7 = arith.constant 7 : index
    %c0_7 = arith.constant 0 : index
    %8 = vector.load %arg1[%c7, %c0_7] : memref<13x128xf32, #tpu.memory_space<vmem>>, vector<1x128xf32>
    %c8 = arith.constant 8 : index
    %c0_8 = arith.constant 0 : index
    %9 = vector.load %arg1[%c8, %c0_8] : memref<13x128xf32, #tpu.memory_space<vmem>>, vector<1x128xf32>
    %c9 = arith.constant 9 : index
    %c0_9 = arith.constant 0 : index
    %10 = vector.load %arg1[%c9, %c0_9] : memref<13x128xf32, #tpu.memory_space<vmem>>, vector<1x128xf32>
    %c10 = arith.constant 10 : index
    %c0_10 = arith.constant 0 : index
    %11 = vector.load %arg1[%c10, %c0_10] : memref<13x128xf32, #tpu.memory_space<vmem>>, vector<1x128xf32>
    %c11 = arith.constant 11 : index
    %c0_11 = arith.constant 0 : index
    %12 = vector.load %arg1[%c11, %c0_11] : memref<13x128xf32, #tpu.memory_space<vmem>>, vector<1x128xf32>
    %c12 = arith.constant 12 : index
    %c0_12 = arith.constant 0 : index
    %13 = vector.load %arg1[%c12, %c0_12] : memref<13x128xf32, #tpu.memory_space<vmem>>, vector<1x128xf32>
    %14 = arith.mulf %5, %5 : vector<1x128xf32>
    %15 = arith.mulf %6, %6 : vector<1x128xf32>
    %16 = arith.addf %14, %15 : vector<1x128xf32>
    %17 = arith.mulf %7, %7 : vector<1x128xf32>
    %18 = arith.addf %16, %17 : vector<1x128xf32>
    %19 = math.sqrt %18 : vector<1x128xf32>
    %cst_13 = arith.constant 9.99999993E-9 : f32
    %20 = vector.broadcast %cst_13 : f32 to vector<1x128xf32>
    %21 = arith.maximumf %19, %20 : vector<1x128xf32>
    %cst_14 = arith.constant 1.000000e-10 : f32
    %22 = vector.broadcast %cst_14 : f32 to vector<1x128xf32>
    %23 = arith.addf %21, %22 : vector<1x128xf32>
    %cst_15 = arith.constant 1.000000e+00 : f32
    %24 = vector.broadcast %cst_15 : f32 to vector<1x128xf32>
    %25 = arith.divf %24, %23 : vector<1x128xf32>
    %26 = arith.mulf %5, %25 : vector<1x128xf32>
    %27 = arith.mulf %6, %25 : vector<1x128xf32>
    %28 = arith.mulf %7, %25 : vector<1x128xf32>
    %29 = arith.mulf %26, %8 : vector<1x128xf32>
    %30 = arith.mulf %27, %9 : vector<1x128xf32>
    %31 = arith.addf %29, %30 : vector<1x128xf32>
    %32 = arith.mulf %28, %10 : vector<1x128xf32>
    %33 = arith.addf %31, %32 : vector<1x128xf32>
    %34 = arith.mulf %26, %26 : vector<1x128xf32>
    %35 = arith.mulf %27, %27 : vector<1x128xf32>
    %36 = arith.addf %34, %35 : vector<1x128xf32>
    %37 = arith.mulf %28, %28 : vector<1x128xf32>
    %38 = arith.addf %36, %37 : vector<1x128xf32>
    %cst_16 = arith.constant 9.99999993E-9 : f32
    %39 = vector.broadcast %cst_16 : f32 to vector<1x128xf32>
    %40 = arith.maximumf %38, %39 : vector<1x128xf32>
    %cst_17 = arith.constant 1.000000e-10 : f32
    %41 = vector.broadcast %cst_17 : f32 to vector<1x128xf32>
    %42 = arith.addf %40, %41 : vector<1x128xf32>
    %43 = arith.divf %33, %42 : vector<1x128xf32>
    %44 = arith.mulf %43, %26 : vector<1x128xf32>
    %45 = arith.subf %8, %44 : vector<1x128xf32>
    %46 = arith.mulf %43, %27 : vector<1x128xf32>
    %47 = arith.subf %9, %46 : vector<1x128xf32>
    %48 = arith.mulf %43, %28 : vector<1x128xf32>
    %49 = arith.subf %10, %48 : vector<1x128xf32>
    %50 = arith.mulf %45, %45 : vector<1x128xf32>
    %51 = arith.mulf %47, %47 : vector<1x128xf32>
    %52 = arith.addf %50, %51 : vector<1x128xf32>
    %53 = arith.mulf %49, %49 : vector<1x128xf32>
    %54 = arith.addf %52, %53 : vector<1x128xf32>
    %55 = math.sqrt %54 : vector<1x128xf32>
    %cst_18 = arith.constant 9.99999993E-9 : f32
    %56 = vector.broadcast %cst_18 : f32 to vector<1x128xf32>
    %57 = arith.maximumf %55, %56 : vector<1x128xf32>
    %cst_19 = arith.constant 1.000000e-10 : f32
    %58 = vector.broadcast %cst_19 : f32 to vector<1x128xf32>
    %59 = arith.addf %57, %58 : vector<1x128xf32>
    %cst_20 = arith.constant 1.000000e+00 : f32
    %60 = vector.broadcast %cst_20 : f32 to vector<1x128xf32>
    %61 = arith.divf %60, %59 : vector<1x128xf32>
    %62 = arith.mulf %45, %61 : vector<1x128xf32>
    %63 = arith.mulf %47, %61 : vector<1x128xf32>
    %64 = arith.mulf %49, %61 : vector<1x128xf32>
    %65 = arith.mulf %27, %64 : vector<1x128xf32>
    %66 = arith.mulf %28, %63 : vector<1x128xf32>
    %67 = arith.subf %65, %66 : vector<1x128xf32>
    %68 = arith.mulf %28, %62 : vector<1x128xf32>
    %69 = arith.mulf %26, %64 : vector<1x128xf32>
    %70 = arith.subf %68, %69 : vector<1x128xf32>
    %71 = arith.mulf %26, %63 : vector<1x128xf32>
    %72 = arith.mulf %27, %62 : vector<1x128xf32>
    %73 = arith.subf %71, %72 : vector<1x128xf32>
    %cst_21 = arith.constant 0.000000e+00 : f32
    %74 = vector.broadcast %cst_21 : f32 to vector<32x128xf32>
    %c0_22 = arith.constant 0 : index
    %c0_23 = arith.constant 0 : index
    %75 = vector.load %arg2[%c0_22, %c0_23] : memref<32x128xf32, #tpu.memory_space<vmem>>, vector<32x128xf32>
    tpu.vector_store %arg2[%c0_22, %c0_23], %74 {strides = array<i32>} : memref<32x128xf32, #tpu.memory_space<vmem>>, vector<32x128xf32>,
    %c0_24 = arith.constant 0 : index
    %c0_25 = arith.constant 0 : index
    %76 = vector.load %arg2[%c0_24, %c0_25] : memref<32x128xf32, #tpu.memory_space<vmem>>, vector<1x128xf32>
    tpu.vector_store %arg2[%c0_24, %c0_25], %1 {strides = array<i32>} : memref<32x128xf32, #tpu.memory_space<vmem>>, vector<1x128xf32>,
    %c2_26 = arith.constant 2 : index
    %c0_27 = arith.constant 0 : index
    %77 = vector.load %arg2[%c2_26, %c0_27] : memref<32x128xf32, #tpu.memory_space<vmem>>, vector<1x128xf32>
    tpu.vector_store %arg2[%c2_26, %c0_27], %3 {strides = array<i32>} : memref<32x128xf32, #tpu.memory_space<vmem>>, vector<1x128xf32>,
    %c5_28 = arith.constant 5 : index
    %c0_29 = arith.constant 0 : index
    %78 = vector.load %arg2[%c5_28, %c0_29] : memref<32x128xf32, #tpu.memory_space<vmem>>, vector<1x128xf32>
    tpu.vector_store %arg2[%c5_28, %c0_29], %2 {strides = array<i32>} : memref<32x128xf32, #tpu.memory_space<vmem>>, vector<1x128xf32>,
    %c6_30 = arith.constant 6 : index
    %c0_31 = arith.constant 0 : index
    %79 = vector.load %arg2[%c6_30, %c0_31] : memref<32x128xf32, #tpu.memory_space<vmem>>, vector<1x128xf32>
    tpu.vector_store %arg2[%c6_30, %c0_31], %4 {strides = array<i32>} : memref<32x128xf32, #tpu.memory_space<vmem>>, vector<1x128xf32>,
    %c10_32 = arith.constant 10 : index
    %c0_33 = arith.constant 0 : index
    %80 = vector.load %arg2[%c10_32, %c0_33] : memref<32x128xf32, #tpu.memory_space<vmem>>, vector<1x128xf32>
    tpu.vector_store %arg2[%c10_32, %c0_33], %0 {strides = array<i32>} : memref<32x128xf32, #tpu.memory_space<vmem>>, vector<1x128xf32>,
    %c15 = arith.constant 15 : index
    %c0_34 = arith.constant 0 : index
    %81 = vector.load %arg2[%c15, %c0_34] : memref<32x128xf32, #tpu.memory_space<vmem>>, vector<1x128xf32>
    tpu.vector_store %arg2[%c15, %c0_34], %0 {strides = array<i32>} : memref<32x128xf32, #tpu.memory_space<vmem>>, vector<1x128xf32>,
    %c16 = arith.constant 16 : index
    %c0_35 = arith.constant 0 : index
    %82 = vector.load %arg2[%c16, %c0_35] : memref<32x128xf32, #tpu.memory_space<vmem>>, vector<1x128xf32>
    tpu.vector_store %arg2[%c16, %c0_35], %26 {strides = array<i32>} : memref<32x128xf32, #tpu.memory_space<vmem>>, vector<1x128xf32>,
    %c17 = arith.constant 17 : index
    %c0_36 = arith.constant 0 : index
    %83 = vector.load %arg2[%c17, %c0_36] : memref<32x128xf32, #tpu.memory_space<vmem>>, vector<1x128xf32>
    tpu.vector_store %arg2[%c17, %c0_36], %62 {strides = array<i32>} : memref<32x128xf32, #tpu.memory_space<vmem>>, vector<1x128xf32>,
    %c18 = arith.constant 18 : index
    %c0_37 = arith.constant 0 : index
    %84 = vector.load %arg2[%c18, %c0_37] : memref<32x128xf32, #tpu.memory_space<vmem>>, vector<1x128xf32>
    tpu.vector_store %arg2[%c18, %c0_37], %67 {strides = array<i32>} : memref<32x128xf32, #tpu.memory_space<vmem>>, vector<1x128xf32>,
    %c19 = arith.constant 19 : index
    %c0_38 = arith.constant 0 : index
    %85 = vector.load %arg2[%c19, %c0_38] : memref<32x128xf32, #tpu.memory_space<vmem>>, vector<1x128xf32>
    tpu.vector_store %arg2[%c19, %c0_38], %11 {strides = array<i32>} : memref<32x128xf32, #tpu.memory_space<vmem>>, vector<1x128xf32>,
    %c20 = arith.constant 20 : index
    %c0_39 = arith.constant 0 : index
    %86 = vector.load %arg2[%c20, %c0_39] : memref<32x128xf32, #tpu.memory_space<vmem>>, vector<1x128xf32>
    tpu.vector_store %arg2[%c20, %c0_39], %27 {strides = array<i32>} : memref<32x128xf32, #tpu.memory_space<vmem>>, vector<1x128xf32>,
    %c21 = arith.constant 21 : index
    %c0_40 = arith.constant 0 : index
    %87 = vector.load %arg2[%c21, %c0_40] : memref<32x128xf32, #tpu.memory_space<vmem>>, vector<1x128xf32>
    tpu.vector_store %arg2[%c21, %c0_40], %63 {strides = array<i32>} : memref<32x128xf32, #tpu.memory_space<vmem>>, vector<1x128xf32>,
    %c22 = arith.constant 22 : index
    %c0_41 = arith.constant 0 : index
    %88 = vector.load %arg2[%c22, %c0_41] : memref<32x128xf32, #tpu.memory_space<vmem>>, vector<1x128xf32>
    tpu.vector_store %arg2[%c22, %c0_41], %70 {strides = array<i32>} : memref<32x128xf32, #tpu.memory_space<vmem>>, vector<1x128xf32>,
    %c23 = arith.constant 23 : index
    %c0_42 = arith.constant 0 : index
    %89 = vector.load %arg2[%c23, %c0_42] : memref<32x128xf32, #tpu.memory_space<vmem>>, vector<1x128xf32>
    tpu.vector_store %arg2[%c23, %c0_42], %12 {strides = array<i32>} : memref<32x128xf32, #tpu.memory_space<vmem>>, vector<1x128xf32>,
    %c24 = arith.constant 24 : index
    %c0_43 = arith.constant 0 : index
    %90 = vector.load %arg2[%c24, %c0_43] : memref<32x128xf32, #tpu.memory_space<vmem>>, vector<1x128xf32>
    tpu.vector_store %arg2[%c24, %c0_43], %28 {strides = array<i32>} : memref<32x128xf32, #tpu.memory_space<vmem>>, vector<1x128xf32>,
    %c25 = arith.constant 25 : index
    %c0_44 = arith.constant 0 : index
    %91 = vector.load %arg2[%c25, %c0_44] : memref<32x128xf32, #tpu.memory_space<vmem>>, vector<1x128xf32>
    tpu.vector_store %arg2[%c25, %c0_44], %64 {strides = array<i32>} : memref<32x128xf32, #tpu.memory_space<vmem>>, vector<1x128xf32>,
    %c26 = arith.constant 26 : index
    %c0_45 = arith.constant 0 : index
    %92 = vector.load %arg2[%c26, %c0_45] : memref<32x128xf32, #tpu.memory_space<vmem>>, vector<1x128xf32>
    tpu.vector_store %arg2[%c26, %c0_45], %73 {strides = array<i32>} : memref<32x128xf32, #tpu.memory_space<vmem>>, vector<1x128xf32>,
    %c27 = arith.constant 27 : index
    %c0_46 = arith.constant 0 : index
    %93 = vector.load %arg2[%c27, %c0_46] : memref<32x128xf32, #tpu.memory_space<vmem>>, vector<1x128xf32>
    tpu.vector_store %arg2[%c27, %c0_46], %13 {strides = array<i32>} : memref<32x128xf32, #tpu.memory_space<vmem>>, vector<1x128xf32>,
    %c31 = arith.constant 31 : index
    %c0_47 = arith.constant 0 : index
    %94 = vector.load %arg2[%c31, %c0_47] : memref<32x128xf32, #tpu.memory_space<vmem>>, vector<1x128xf32>
    tpu.vector_store %arg2[%c31, %c0_47], %0 {strides = array<i32>} : memref<32x128xf32, #tpu.memory_space<vmem>>, vector<1x128xf32>,
    return
  }
  func.func @transform_0(%arg0: i32) -> (i32, i32) {
    %c0_i32 = arith.constant 0 : i32
    %c0_i32_0 = arith.constant 0 : i32
    return %c0_i32, %arg0 : i32, i32
  }
  func.func @transform_1(%arg0: i32) -> (i32, i32) {
    %c0_i32 = arith.constant 0 : i32
    %c0_i32_0 = arith.constant 0 : i32
    return %c0_i32, %arg0 : i32, i32
  }
}

</mosaic_0001>

<llo_original>
// kernel: tpu_custom_call.1
$region0: #{tpu_custom_call.1}
  #allocation0 [shape = 'u32[]', space=smem, size = 0x4, offset = 0x4, fixed_abs, tag = 'smem constant byte address 0x4 - core index']
  #allocation1 [shape = 'u32[144,128]{1,0:T(1,128)}', space=vmem, size = 0x12000, scoped, tag = 'internal scratch']
  %s0 = inlined_call_operand.hbm [shape: f32[13,128], index: 0, kind: input, shape index: {}]
  %s1 = inlined_call_operand.hbm [shape: f32[32,128], index: 1, kind: output, shape index: {}]
  %s2 = sld [smem:[#allocation0]]
  $region18: #{tpu_custom_call.1} parent=0
    _
  %s4 = ssub.s32 1, %s2
  %s5 = scalar_select 0, %s4, %s2
  $region1: #{tpu_custom_call.1} parent=0
    #allocation2 [shape = 'u8[8192]{0}', space=vmem, size = 0x2000, scoped, tag = 'input window, operand 0, single buffered']
    #allocation3 [shape = 's32[1]{0}', space=sflag, size = 0x4, scoped, tag = 'scoped memory for tpu_custom_call.1']
    #allocation4 [shape = 's32[1]{0}', space=sflag, size = 0x4, scoped, tag = 'scoped memory for tpu_custom_call.1']
    #allocation5 [shape = 'u8[16384]{0}', space=vmem, size = 0x4000, scoped, tag = 'output window, operand 0, single buffered']
    %6 = vsyncpa [#allocation3], 0
    %7 = vsyncpa [#allocation4], 0
    // Predicated region
    $region2: #{tpu_custom_call.1} parent=1 // pred_check
      _
    $region3: #{tpu_custom_call.1} parent=1 // pred_check_branch
      %9 = sbr.rel (0) target = $region5
    $region4: #{tpu_custom_call.1} parent=1 // pred_region
      %s11 = ssub.s32 256, 256
      %12 = vsyncadd [#allocation3], %s11
      %s13 = sshll.u32 [#allocation2], 4
      %s14 = int_to_ptr.vmem [resolvable:$true] %s13
      %19 = dma.hbm_to_vmem [thread:$0]  %s0, 256, %s14, [#allocation3], 128, 128, 8
    $region5: #{tpu_custom_call.1} parent=1 // pred_fallthru
      _
    // Predicated region
    $region6: #{tpu_custom_call.1} parent=1 // pred_check
      _
    $region7: #{tpu_custom_call.1} parent=1 // pred_check_branch
      %21 = sbr.rel (0) target = $region9
    $region8: #{tpu_custom_call.1} parent=1 // pred_region
      %22 = dma.done [#allocation3], 256
    $region9: #{tpu_custom_call.1} parent=1 // pred_fallthru
      _
    %v23 = vld [vmem:[#allocation2] sm:$0x1]
    %v24 = vld [vmem:[#allocation2 + $0x1] sm:$0x1]
    %v25 = vld [vmem:[#allocation2 + $0x2] sm:$0x1]
    %v26 = vld [vmem:[#allocation2 + $0x3] sm:$0x1]
    %v27 = vld [vmem:[#allocation2 + $0x4] sm:$0x1]
    %v28 = vld [vmem:[#allocation2 + $0x5] sm:$0x1]
    %v29 = vld [vmem:[#allocation2 + $0x6] sm:$0x1]
    %v30 = vld [vmem:[#allocation2 + $0x7] sm:$0x1]
    %v31 = vld [vmem:[#allocation2 + $0x8] sm:$0x1]
    %v32 = vld [vmem:[#allocation2 + $0x9] sm:$0x1]
    %v33 = vld [vmem:[#allocation2 + $0xa] sm:$0x1]
    %v34 = vld [vmem:[#allocation2 + $0xb] sm:$0x1]
    %v35 = vld [vmem:[#allocation2 + $0xc] sm:$0x1]
    %v36 = vmul.f32 %v27, %v27
    %v37 = vmul.f32 %v28, %v28
    %v38 = vadd.f32 %v36, %v37
    %v39 = vmul.f32 %v29, %v29
    %v40 = vadd.f32 %v38, %v39
    %v41 = vrsqrt.pop %v40
    %v42 = vmul.f32 %v40, %v41
    %vm43 = vcmp.eq.f32.partialorder %v40, inf
    %v44 = vsel %vm43, %v40, %v42
    %vm45 = vcmp.eq.f32.partialorder %v40, 0.0
    %v46 = vand.u32 %v40, 2147483648
    %v47 = vsel %vm45, %v46, %v44
    %v48 = vmax.f32 %v47, 1e-08
    %v49 = vadd.f32 %v48, 1e-10
    %v50 = vrcp.pop %v49
    %v51 = vmul.f32 1.0, %v50
    %v52 = vmul.f32 %v27, %v51
    %v53 = vmul.f32 %v28, %v51
    %v54 = vmul.f32 %v29, %v51
    %v55 = vmul.f32 %v52, %v30
    %v56 = vmul.f32 %v53, %v31
    %v57 = vadd.f32 %v55, %v56
    %v58 = vmul.f32 %v54, %v32
    %v59 = vadd.f32 %v57, %v58
    %v60 = vmul.f32 %v52, %v52
    %v61 = vmul.f32 %v53, %v53
    %v62 = vadd.f32 %v60, %v61
    %v63 = vmul.f32 %v54, %v54
    %v64 = vadd.f32 %v62, %v63
    %v65 = vmax.f32 %v64, 1e-08
    %v66 = vadd.f32 %v65, 1e-10
    %v67 = vrcp.pop %v66
    %v68 = vmul.f32 %v59, %v67
    %v69 = vmul.f32 %v68, %v52
    %v70 = vsub.f32 %v30, %v69
    %v71 = vmul.f32 %v68, %v53
    %v72 = vsub.f32 %v31, %v71
    %v73 = vmul.f32 %v68, %v54
    %v74 = vsub.f32 %v32, %v73
    %v75 = vmul.f32 %v70, %v70
    %v76 = vmul.f32 %v72, %v72
    %v77 = vadd.f32 %v75, %v76
    %v78 = vmul.f32 %v74, %v74
    %v79 = vadd.f32 %v77, %v78
    %v80 = vrsqrt.pop %v79
    %v81 = vmul.f32 %v79, %v80
    %vm82 = vcmp.eq.f32.partialorder %v79, inf
    %v83 = vsel %vm82, %v79, %v81
    %vm84 = vcmp.eq.f32.partialorder %v79, 0.0
    %v85 = vand.u32 %v79, 2147483648
    %v86 = vsel %vm84, %v85, %v83
    %v87 = vmax.f32 %v86, 1e-08
    %v88 = vadd.f32 %v87, 1e-10
    %v89 = vrcp.pop %v88
    %v90 = vmul.f32 1.0, %v89
    %v91 = vmul.f32 %v70, %v90
    %v92 = vmul.f32 %v72, %v90
    %v93 = vmul.f32 %v74, %v90
    %v94 = vmul.f32 %v53, %v93
    %v95 = vmul.f32 %v54, %v92
    %v96 = vsub.f32 %v94, %v95
    %v97 = vmul.f32 %v54, %v91
    %v98 = vmul.f32 %v52, %v93
    %v99 = vsub.f32 %v97, %v98
    %v100 = vmul.f32 %v52, %v92
    %v101 = vmul.f32 %v53, %v91
    %v102 = vsub.f32 %v100, %v101
    %103 = vst [vmem:[#allocation5] sm:$0xff] 0.0
    %104 = vst [vmem:[#allocation5 + $0x8] sm:$0xff] 0.0
    %105 = vst [vmem:[#allocation5 + $0x10] sm:$0xff] 0.0
    %106 = vst [vmem:[#allocation5 + $0x18] sm:$0xff] 0.0
    %107 = vst [vmem:[#allocation5] sm:$0x1] %v23
    %108 = vst [vmem:[#allocation5 + $0x2] sm:$0x1] %v25
    %109 = vst [vmem:[#allocation5 + $0x5] sm:$0x1] %v24
    %110 = vst [vmem:[#allocation5 + $0x6] sm:$0x1] %v26
    %111 = vst [vmem:[#allocation5 + $0xa] sm:$0x1] 1.0
    %112 = vst [vmem:[#allocation5 + $0xf] sm:$0x1] 1.0
    %113 = vst [vmem:[#allocation5 + $0x10] sm:$0x1] %v52
    %114 = vst [vmem:[#allocation5 + $0x11] sm:$0x1] %v91
    %115 = vst [vmem:[#allocation5 + $0x12] sm:$0x1] %v96
    %116 = vst [vmem:[#allocation5 + $0x13] sm:$0x1] %v33
    %117 = vst [vmem:[#allocation5 + $0x14] sm:$0x1] %v53
    %118 = vst [vmem:[#allocation5 + $0x15] sm:$0x1] %v92
    %119 = vst [vmem:[#allocation5 + $0x16] sm:$0x1] %v99
    %120 = vst [vmem:[#allocation5 + $0x17] sm:$0x1] %v34
    %121 = vst [vmem:[#allocation5 + $0x18] sm:$0x1] %v54
    %122 = vst [vmem:[#allocation5 + $0x19] sm:$0x1] %v93
    %123 = vst [vmem:[#allocation5 + $0x1a] sm:$0x1] %v102
    %124 = vst [vmem:[#allocation5 + $0x1b] sm:$0x1] %v35
    %125 = vst [vmem:[#allocation5 + $0x1f] sm:$0x1] 1.0
    // Predicated region
    $region10: #{tpu_custom_call.1} parent=1 // pred_check
      _
    $region11: #{tpu_custom_call.1} parent=1 // pred_check_branch
      %127 = sbr.rel (0) target = $region13
    $region12: #{tpu_custom_call.1} parent=1 // pred_region
      %s129 = ssub.s32 512, 512
      %130 = vsyncadd [#allocation4], %s129
      %s131 = sshll.u32 [#allocation5], 4
      %s132 = int_to_ptr.vmem [resolvable:$true] %s131
      %137 = dma.vmem_to_hbm [thread:$0]  %s132, 512, %s1, [#allocation4], 128, 128, 8
    $region13: #{tpu_custom_call.1} parent=1 // pred_fallthru
      _
    // Predicated region
    $region14: #{tpu_custom_call.1} parent=1 // pred_check
      _
    $region15: #{tpu_custom_call.1} parent=1 // pred_check_branch
      %139 = sbr.rel (0) target = $region17
    $region16: #{tpu_custom_call.1} parent=1 // pred_region
      %140 = dma.done [#allocation4], 512
    $region17: #{tpu_custom_call.1} parent=1 // pred_fallthru
      _
    %141 = vsyncpa [#allocation3], 1
    %142 = vsyncpa [#allocation4], 1

</llo_original>
